<compile_context>
chip_gen: v7x
topology: tpu7x:2x2x1
jax: 0.10.0
libtpu: 0.0.40
codegen_flags: <defaults>
</compile_context>

<pallas_src>
import functools

import jax
import jax.numpy as jnp
from jax.experimental import pallas as pl
from jax.experimental.pallas import tpu as pltpu

EPS = 1e-6


def _local_rnn_layer_kernel(x_ref, a2_ref, b2_ref, w_ref, bias_ref, o_ref,
                            *, matmul_dtype, approx_recip):
    # x_ref: (TR, D) rows (native dtype); a2/b2/bias: (1, D); w: (D, D).
    x = x_ref[...].astype(jnp.float32)          # in-kernel upcast (no HBM copy)
    d = x.shape[-1]

    # --- LayerNorm (torch: mean, UNBIASED std /(D-1), eps added to std) ---
    mean = jnp.mean(x, axis=-1, keepdims=True)
    xc = x - mean
    var_unbiased = jnp.sum(xc * xc, axis=-1, keepdims=True) * (1.0 / (d - 1))
    std = jnp.sqrt(var_unbiased)
    inv_std = pl.reciprocal(std + EPS, approx=approx_recip)   # EUP when approx
    a2 = a2_ref[...].astype(jnp.float32)
    b2 = b2_ref[...].astype(jnp.float32)
    normed = xc * (inv_std * a2) + b2           # a2 folded into inv_std factor

    # --- LocalRNN('Linear'): per-position Linear(D -> D) on the MXU ---
    sub = jnp.dot(normed.astype(matmul_dtype),
                  w_ref[...].astype(matmul_dtype),
                  preferred_element_type=jnp.float32)
    sub = sub + bias_ref[...].astype(jnp.float32)

    # --- dropout (eval mode => identity) + residual (f32) ---
    # TODO(synk): training-mode dropout (pltpu.prng_random_bits mask) not
    #             emitted; eval-mode dropout is an exact identity.
    o_ref[...] = (x + sub).astype(o_ref.dtype)


def local_rnn_layer(x, a2, b2, w, bias, *, block_rows=512,
                    matmul_dtype=jnp.bfloat16, approx_recip=True):
    """x: (B, S, D) -> (B, S, D) float32.  Row-tiled, pipelined Pallas kernel."""
    B, S, D = x.shape
    R = B * S
    x2d = x.reshape(R, D)            # metadata-only; no dtype copy in wrapper
    a2_2d = a2.reshape(1, D)
    b2_2d = b2.reshape(1, D)
    bias_2d = bias.reshape(1, D)

    # Row tile: multiple of 8 (sublane) or the full row count.
    if R <= block_rows:
        tr = R
    else:
        tr = max(8, (block_rows // 8) * 8)
    grid = (pl.cdiv(R, tr),)

    x_itemsize = jnp.dtype(x.dtype).itemsize
    w_itemsize = jnp.dtype(w.dtype).itemsize
    cost = pl.CostEstimate(
        flops=2 * R * D * D,
        transcendentals=2 * R,                         # sqrt + reciprocal per row
        bytes_accessed=R * D * (x_itemsize + 4)        # x read + f32 out write
        + D * D * w_itemsize + 3 * D * 4,
    )

    # VMEM budget: double-buffered x/out tiles + resident params + slack.
    # NOTE: re-derive block_rows for v7x (64 MiB physical VMEM) at large D.
    vmem_need = 2 * tr * D * (x_itemsize + 4) + D * D * 4 + 8 * D * 4
    vmem_limit = int(min(max(vmem_need + (4 << 20), 32 << 20), 64 << 20))

    kernel = functools.partial(_local_rnn_layer_kernel,
                               matmul_dtype=matmul_dtype,
                               approx_recip=approx_recip)

    out2d = pl.pallas_call(
        kernel,
        out_shape=jax.ShapeDtypeStruct((R, D), jnp.float32),
        grid_spec=pltpu.PrefetchScalarGridSpec(
            num_scalar_prefetch=0,
            grid=grid,
            in_specs=[
                pl.BlockSpec((tr, D), lambda i: (i, 0)),   # x: tiled over rows
                pl.BlockSpec((1, D), lambda i: (0, 0)),    # a2 (VMEM-resident)
                pl.BlockSpec((1, D), lambda i: (0, 0)),    # b2
                pl.BlockSpec((D, D), lambda i: (0, 0)),    # w
                pl.BlockSpec((1, D), lambda i: (0, 0)),    # bias
            ],
            out_specs=pl.BlockSpec((tr, D), lambda i: (i, 0)),
        ),
        compiler_params=pltpu.CompilerParams(
            dimension_semantics=("parallel",),   # rows independent -> megacore
            vmem_limit_bytes=vmem_limit,
        ),
        cost_estimate=cost,
    )(x2d, a2_2d, b2_2d, w, bias_2d)

    return out2d.reshape(B, S, D)


def reference_f32(x, a2, b2, w, bias):
    """Pure-JAX f32 reference mirroring the PyTorch forward (rnn_type='Linear')."""
    x = x.astype(jnp.float32)
    d = x.shape[-1]
    mean = jnp.mean(x, axis=-1, keepdims=True)
    xc = x - mean
    std = jnp.sqrt(jnp.sum(xc * xc, axis=-1, keepdims=True) / (d - 1))
    normed = a2 * xc / (std + EPS) + b2
    sub = normed @ w + bias      # LocalRNN('Linear'): last window slot == x_t
    return x + sub


if __name__ == "__main__":
    B, S, D = 2, 8, 32   # batch, seq, hidden (= output_dim / `size`)
    # ksize of the LocalRNN window is irrelevant for rnn_type='Linear' (the
    # module keeps only the last window slot, which is always x_t).

    key = jax.random.PRNGKey(0)
    kx, kw = jax.random.split(key)

    x = jax.random.normal(kx, (B, S, D), dtype=jnp.float32)

    # LayerNorm params as in __init__: ones / zeros.
    a2 = jnp.ones((D,), dtype=jnp.float32)
    b2 = jnp.zeros((D,), dtype=jnp.float32)

    # LocalRNN('Linear') params (deterministic).
    w = jax.random.normal(kw, (D, D), dtype=jnp.float32) * (1.0 / jnp.sqrt(D))
    bias = jnp.zeros((D,), dtype=jnp.float32)

    ref = reference_f32(x, a2, b2, w, bias)

    # Perf-tuned path: row-tiled grid (block_rows=8 -> 2 grid steps at this
    # demo size), bf16 MXU operands, EUP approx reciprocal.
    out = local_rnn_layer(x, a2, b2, w, bias, block_rows=8,
                          matmul_dtype=jnp.bfloat16, approx_recip=True)
    out = jax.block_until_ready(out)
    assert out.shape == (B, S, D)
    # Tolerance reflects bf16 MXU operands (f32 accumulation + f32 residual).
    assert jnp.allclose(out, ref, atol=5e-2, rtol=5e-2), "bf16 path mismatch"

    # Exact path (f32 MXU operands, exact reciprocal): tight check.
    out_exact = local_rnn_layer(x, a2, b2, w, bias, block_rows=8,
                                matmul_dtype=jnp.float32, approx_recip=False)
    out_exact = jax.block_until_ready(out_exact)
    assert jnp.allclose(out_exact, ref, atol=1e-4, rtol=1e-4), "f32 path mismatch"

    print("KERNEL_OK")
</pallas_src>

<mosaic_0001>
module attributes {stable_mosaic.version = 11 : i64} {
  func.func @_local_rnn_layer_kernel(%arg0: i32, %arg1: memref<8x32xf32, #tpu.memory_space<vmem>>, %arg2: memref<1x32xf32, #tpu.memory_space<vmem>>, %arg3: memref<1x32xf32, #tpu.memory_space<vmem>>, %arg4: memref<32x32xf32, #tpu.memory_space<vmem>>, %arg5: memref<1x32xf32, #tpu.memory_space<vmem>>, %arg6: memref<8x32xf32, #tpu.memory_space<vmem>>) attributes {dimension_semantics = [#tpu.dimension_semantics<parallel>], iteration_bounds = array<i64: 2>, scalar_prefetch = 0 : i64, scratch_operands = 0 : i64, tpu.core_type = #tpu.core_type<tc>, window_params = [{transform_indices = @transform_0, window_bounds = array<i64: 8, 32>}, {pipeline_mode = #tpu.pipeline_mode<synchronous>, transform_indices = @transform_1, window_bounds = array<i64: 1, 32>}, {pipeline_mode = #tpu.pipeline_mode<synchronous>, transform_indices = @transform_2, window_bounds = array<i64: 1, 32>}, {pipeline_mode = #tpu.pipeline_mode<synchronous>, transform_indices = @transform_3, window_bounds = array<i64: 32, 32>}, {pipeline_mode = #tpu.pipeline_mode<synchronous>, transform_indices = @transform_4, window_bounds = array<i64: 1, 32>}, {transform_indices = @transform_5, window_bounds = array<i64: 8, 32>}]} {
    %c0 = arith.constant 0 : index
    %c0_0 = arith.constant 0 : index
    %0 = vector.load %arg1[%c0, %c0_0] : memref<8x32xf32, #tpu.memory_space<vmem>>, vector<8x32xf32>
    %cst = arith.constant dense<0.000000e+00> : vector<8xf32>
    %1 = vector.multi_reduction <add>, %0, %cst [1] : vector<8x32xf32> to vector<8xf32>
    %2 = vector.shape_cast %1 : vector<8xf32> to vector<8x1xf32>
    %cst_1 = arith.constant 3.200000e+01 : f32
    %3 = vector.broadcast %cst_1 : f32 to vector<8x1xf32>
    %4 = arith.divf %2, %3 : vector<8x1xf32>
    %5 = vector.broadcast %4 : vector<8x1xf32> to vector<8x32xf32>
    %6 = arith.subf %0, %5 : vector<8x32xf32>
    %7 = arith.mulf %6, %6 : vector<8x32xf32>
    %cst_2 = arith.constant dense<0.000000e+00> : vector<8xf32>
    %8 = vector.multi_reduction <add>, %7, %cst_2 [1] : vector<8x32xf32> to vector<8xf32>
    %9 = vector.shape_cast %8 : vector<8xf32> to vector<8x1xf32>
    %cst_3 = arith.constant 0.0322580636 : f32
    %10 = vector.broadcast %cst_3 : f32 to vector<8x1xf32>
    %11 = arith.mulf %9, %10 : vector<8x1xf32>
    %12 = math.sqrt %11 : vector<8x1xf32>
    %cst_4 = arith.constant 9.99999997E-7 : f32
    %13 = vector.broadcast %cst_4 : f32 to vector<8x1xf32>
    %14 = arith.addf %12, %13 : vector<8x1xf32>
    %15 = tpu.reciprocal %14 {approx = true} : vector<8x1xf32> -> vector<8x1xf32>
    %c0_5 = arith.constant 0 : index
    %c0_6 = arith.constant 0 : index
    %16 = vector.load %arg2[%c0_5, %c0_6] : memref<1x32xf32, #tpu.memory_space<vmem>>, vector<1x32xf32>
    %c0_7 = arith.constant 0 : index
    %c0_8 = arith.constant 0 : index
    %17 = vector.load %arg3[%c0_7, %c0_8] : memref<1x32xf32, #tpu.memory_space<vmem>>, vector<1x32xf32>
    %18 = vector.broadcast %15 : vector<8x1xf32> to vector<8x32xf32>
    %19 = vector.broadcast %16 : vector<1x32xf32> to vector<8x32xf32>
    %20 = arith.mulf %18, %19 : vector<8x32xf32>
    %21 = arith.mulf %6, %20 : vector<8x32xf32>
    %22 = vector.broadcast %17 : vector<1x32xf32> to vector<8x32xf32>
    %23 = arith.addf %21, %22 : vector<8x32xf32>
    %24 = arith.truncf %23 : vector<8x32xf32> to vector<8x32xbf16>
    %c0_9 = arith.constant 0 : index
    %c0_10 = arith.constant 0 : index
    %25 = vector.load %arg4[%c0_9, %c0_10] : memref<32x32xf32, #tpu.memory_space<vmem>>, vector<32x32xf32>
    %26 = arith.truncf %25 : vector<32x32xf32> to vector<32x32xbf16>
    %cst_11 = arith.constant dense<0.000000e+00> : vector<8x32xf32>
    %27 = tpu.matmul %24, %26, %cst_11 {dimension_numbers = #tpu.dot_dimension_numbers<[1], [0], [0], [1], [0, 0, 1, 1], [], []>} : vector<8x32xbf16>, vector<32x32xbf16>, vector<8x32xf32> -> vector<8x32xf32>
    %c0_12 = arith.constant 0 : index
    %c0_13 = arith.constant 0 : index
    %28 = vector.load %arg5[%c0_12, %c0_13] : memref<1x32xf32, #tpu.memory_space<vmem>>, vector<1x32xf32>
    %29 = vector.broadcast %28 : vector<1x32xf32> to vector<8x32xf32>
    %30 = arith.addf %27, %29 : vector<8x32xf32>
    %31 = arith.addf %0, %30 : vector<8x32xf32>
    %c0_14 = arith.constant 0 : index
    %c0_15 = arith.constant 0 : index
    %32 = vector.load %arg6[%c0_14, %c0_15] : memref<8x32xf32, #tpu.memory_space<vmem>>, vector<8x32xf32>
    tpu.vector_store %arg6[%c0_14, %c0_15], %31 {strides = array<i32>} : memref<8x32xf32, #tpu.memory_space<vmem>>, vector<8x32xf32>,
    return
  }
  func.func @transform_0(%arg0: i32) -> (i32, i32) {
    %c0_i32 = arith.constant 0 : i32
    %c0_i32_0 = arith.constant 0 : i32
    return %arg0, %c0_i32 : i32, i32
  }
  func.func @transform_1(%arg0: i32) -> (i32, i32) {
    %c0_i32 = arith.constant 0 : i32
    %c0_i32_0 = arith.constant 0 : i32
    %c0_i32_1 = arith.constant 0 : i32
    return %c0_i32, %c0_i32_0 : i32, i32
  }
  func.func @transform_2(%arg0: i32) -> (i32, i32) {
    %c0_i32 = arith.constant 0 : i32
    %c0_i32_0 = arith.constant 0 : i32
    %c0_i32_1 = arith.constant 0 : i32
    return %c0_i32, %c0_i32_0 : i32, i32
  }
  func.func @transform_3(%arg0: i32) -> (i32, i32) {
    %c0_i32 = arith.constant 0 : i32
    %c0_i32_0 = arith.constant 0 : i32
    %c0_i32_1 = arith.constant 0 : i32
    return %c0_i32, %c0_i32_0 : i32, i32
  }
  func.func @transform_4(%arg0: i32) -> (i32, i32) {
    %c0_i32 = arith.constant 0 : i32
    %c0_i32_0 = arith.constant 0 : i32
    %c0_i32_1 = arith.constant 0 : i32
    return %c0_i32, %c0_i32_0 : i32, i32
  }
  func.func @transform_5(%arg0: i32) -> (i32, i32) {
    %c0_i32 = arith.constant 0 : i32
    %c0_i32_0 = arith.constant 0 : i32
    return %arg0, %c0_i32 : i32, i32
  }
}

</mosaic_0001>

<llo_original>
// kernel: tpu_custom_call.1
$region0: #{tpu_custom_call.1}
  #allocation0 [shape = 'u32[]', space=smem, size = 0x4, offset = 0x4, fixed_abs, tag = 'smem constant byte address 0x4 - core index']
  #allocation1 [shape = 'u32[144,128]{1,0:T(1,128)}', space=vmem, size = 0x12000, scoped, tag = 'internal scratch']
  %s0 = inlined_call_operand.hbm [shape: f32[16,32], index: 0, kind: input, shape index: {}]
  %s1 = inlined_call_operand.vmem [shape: f32[1,32], index: 1, kind: input, shape index: {}]
  %s2 = inlined_call_operand.vmem [shape: f32[1,32], index: 2, kind: input, shape index: {}]
  %s3 = inlined_call_operand.hbm [shape: f32[32,32], index: 3, kind: input, shape index: {}]
  %s4 = inlined_call_operand.vmem [shape: f32[1,32], index: 4, kind: input, shape index: {}]
  %s5 = inlined_call_operand.hbm [shape: f32[16,32], index: 5, kind: output, shape index: {}]
  %s6 = sld [smem:[#allocation0]]
  $region61: #{tpu_custom_call.1} parent=0
    _
  %s8 = ssub.s32 1, %s6
  %s9 = scalar_select 0, %s8, %s6
  $region1: #{tpu_custom_call.1} parent=0
    #allocation2 [shape = 'u8[8192]{0}', space=vmem, size = 0x2000, scoped, tag = 'input window, operand 0']
    #allocation3 [shape = 's32[2]{0}', space=sflag, size = 0x8, scoped, tag = 'scoped memory for tpu_custom_call.1']
    #allocation4 [shape = 's32[2]{0}', space=sflag, size = 0x8, scoped, tag = 'scoped memory for tpu_custom_call.1']
    #allocation5 [shape = 'u8[16384]{0}', space=vmem, size = 0x4000, scoped, tag = 'input window, operand 3, single buffered']
    #allocation6 [shape = 's32[1]{0}', space=sflag, size = 0x4, scoped, tag = 'scoped memory for tpu_custom_call.1']
    #allocation7 [shape = 'u8[8192]{0}', space=vmem, size = 0x2000, scoped, tag = 'output window, operand 0']
    %10 = vsyncpa [#allocation3], 0
    %s11 = scalar_lea.sflag [#allocation3], 1
    %12 = vsyncpa %s11, 0
    %13 = vsyncpa [#allocation6], 0
    %14 = vsyncpa [#allocation4], 0
    %s15 = scalar_lea.sflag [#allocation4], 1
    %16 = vsyncpa %s15, 0
    loop: start=0, step=1, limit=4
    $region2: #{tpu_custom_call.1} parent=1 // loop_pre_header
      _
    $region3: #{tpu_custom_call.1} parent=1 // loop_header
      %s18 = sphi 0, %s22
      %p19 = scmp.ge.s32.totalorder %s18, 4
      %s28 = sphi 0, %s30
      %s31 = sphi 0, %s28
      %s32 = sphi 0, %s31
      %s48 = sphi 0, %s32
      %s52 = sphi 0, %s52
      %s54 = sphi 0, %s52
      %s55 = sphi 0, %s54
      %s69 = sphi 0, %s55
      %s73 = sphi 0, %s73
      %s75 = sphi 0, %s73
      %s76 = sphi 0, %s75
      %s90 = sphi 0, %s76
      %s94 = sphi 0, %s94
      %s96 = sphi 0, %s94
      %s97 = sphi 0, %s96
      %s111 = sphi 0, %s97
      %s115 = sphi 0, %s115
      %s117 = sphi 0, %s115
      %s118 = sphi 0, %s117
      %s132 = sphi 0, %s118
      %s138 = sphi 0, %s140
      %s141 = sphi 0, %s138
      %s142 = sphi 0, %s141
      %s158 = sphi 0, %s142
    $region4: #{tpu_custom_call.1} parent=1 // loop_header_branch
      %21 = sbr.rel (%p19) target = $region8
    $region5: #{tpu_custom_call.1} parent=1 // loop_body
      %s23 = ssub.s32 %s18, 1
      %s24 = ssub.s32 %s18, 2
      %s25 = sadd.s32 %s18, 1
      %s26 = ssub.s32 %s18, %s25
      %p27 = scmp.eq.s32.totalorder %s26, 0
      %s29 = sadd.s32 %s28, 1
      %s30 = scalar_select %p27, %s28, %s29
      %p33 = pneg %p27
      %p34 = scmp.eq.s32.totalorder %s18, 1
      %p35 = por %p33, %p34
      %p36 = scmp.ne.s32.totalorder %s28, %s31
      %p37 = scmp.eq.s32.totalorder %s18, 0
      %p38 = por %p36, %p37
      %p39 = scmp.ne.s32.totalorder %s28, %s31
      %p40 = scmp.eq.s32.totalorder %s23, 1
      %p41 = por %p39, %p40
      %p42 = scmp.ne.s32.totalorder %s31, %s32
      %p43 = scmp.eq.s32.totalorder %s23, 0
      %p44 = por %p42, %p43
      %p45 = scmp.ne.s32.totalorder %s31, %s32
      %p46 = scmp.eq.s32.totalorder %s24, 1
      %p47 = por %p45, %p46
      %p49 = scmp.ne.s32.totalorder %s32, %s48
      %p50 = scmp.eq.s32.totalorder %s24, 0
      %p51 = por %p49, %p50
      %s53 = sadd.s32 %s52, 1
      %p56 = scmp.eq.s32.totalorder %s18, 1
      %p57 = scmp.ne.s32.totalorder %s52, %s54
      %p58 = scmp.eq.s32.totalorder %s18, 0
      %p59 = por %p57, %p58
      %p60 = scmp.ne.s32.totalorder %s52, %s54
      %p61 = scmp.eq.s32.totalorder %s23, 1
      %p62 = por %p60, %p61
      %p63 = scmp.ne.s32.totalorder %s54, %s55
      %p64 = scmp.eq.s32.totalorder %s23, 0
      %p65 = por %p63, %p64
      %p66 = scmp.ne.s32.totalorder %s54, %s55
      %p67 = scmp.eq.s32.totalorder %s24, 1
      %p68 = por %p66, %p67
      %p70 = scmp.ne.s32.totalorder %s55, %s69
      %p71 = scmp.eq.s32.totalorder %s24, 0
      %p72 = por %p70, %p71
      %s74 = sadd.s32 %s73, 1
      %p77 = scmp.eq.s32.totalorder %s18, 1
      %p78 = scmp.ne.s32.totalorder %s73, %s75
      %p79 = scmp.eq.s32.totalorder %s18, 0
      %p80 = por %p78, %p79
      %p81 = scmp.ne.s32.totalorder %s73, %s75
      %p82 = scmp.eq.s32.totalorder %s23, 1
      %p83 = por %p81, %p82
      %p84 = scmp.ne.s32.totalorder %s75, %s76
      %p85 = scmp.eq.s32.totalorder %s23, 0
      %p86 = por %p84, %p85
      %p87 = scmp.ne.s32.totalorder %s75, %s76
      %p88 = scmp.eq.s32.totalorder %s24, 1
      %p89 = por %p87, %p88
      %p91 = scmp.ne.s32.totalorder %s76, %s90
      %p92 = scmp.eq.s32.totalorder %s24, 0
      %p93 = por %p91, %p92
      %s95 = sadd.s32 %s94, 1
      %p98 = scmp.eq.s32.totalorder %s18, 1
      %p99 = scmp.ne.s32.totalorder %s94, %s96
      %p100 = scmp.eq.s32.totalorder %s18, 0
      %p101 = por %p99, %p100
      %p102 = scmp.ne.s32.totalorder %s94, %s96
      %p103 = scmp.eq.s32.totalorder %s23, 1
      %p104 = por %p102, %p103
      %p105 = scmp.ne.s32.totalorder %s96, %s97
      %p106 = scmp.eq.s32.totalorder %s23, 0
      %p107 = por %p105, %p106
      %p108 = scmp.ne.s32.totalorder %s96, %s97
      %p109 = scmp.eq.s32.totalorder %s24, 1
      %p110 = por %p108, %p109
      %p112 = scmp.ne.s32.totalorder %s97, %s111
      %p113 = scmp.eq.s32.totalorder %s24, 0
      %p114 = por %p112, %p113
      %s116 = sadd.s32 %s115, 1
      %p119 = scmp.eq.s32.totalorder %s18, 1
      %p120 = scmp.ne.s32.totalorder %s115, %s117
      %p121 = scmp.eq.s32.totalorder %s18, 0
      %p122 = por %p120, %p121
      %p123 = scmp.ne.s32.totalorder %s115, %s117
      %p124 = scmp.eq.s32.totalorder %s23, 1
      %p125 = por %p123, %p124
      %p126 = scmp.ne.s32.totalorder %s117, %s118
      %p127 = scmp.eq.s32.totalorder %s23, 0
      %p128 = por %p126, %p127
      %p129 = scmp.ne.s32.totalorder %s117, %s118
      %p130 = scmp.eq.s32.totalorder %s24, 1
      %p131 = por %p129, %p130
      %p133 = scmp.ne.s32.totalorder %s118, %s132
      %p134 = scmp.eq.s32.totalorder %s24, 0
      %p135 = por %p133, %p134
      %s136 = ssub.s32 %s18, %s25
      %p137 = scmp.eq.s32.totalorder %s136, 0
      %s139 = sadd.s32 %s138, 1
      %s140 = scalar_select %p137, %s138, %s139
      %p143 = pneg %p137
      %p144 = scmp.eq.s32.totalorder %s18, 1
      %p145 = por %p143, %p144
      %p146 = scmp.ne.s32.totalorder %s138, %s141
      %p147 = scmp.eq.s32.totalorder %s18, 0
      %p148 = por %p146, %p147
      %p149 = scmp.ne.s32.totalorder %s138, %s141
      %p150 = scmp.eq.s32.totalorder %s23, 1
      %p151 = por %p149, %p150
      %p152 = scmp.ne.s32.totalorder %s141, %s142
      %p153 = scmp.eq.s32.totalorder %s23, 0
      %p154 = por %p152, %p153
      %p155 = scmp.ne.s32.totalorder %s141, %s142
      %p156 = scmp.eq.s32.totalorder %s24, 1
      %p157 = por %p155, %p156
      %p159 = scmp.ne.s32.totalorder %s142, %s158
      %p160 = scmp.eq.s32.totalorder %s24, 0
      %p161 = por %p159, %p160
      %p162 = scmp.le.s32.totalorder 1, %s18
      %p163 = scmp.lt.s32.totalorder %s18, 3
      %p164 = pnand %p162, %p163
      %p165 = pneg %p164
      // Predicated region
      $region9: #{tpu_custom_call.1} parent=5 // pred_check
        _
      $region10: #{tpu_custom_call.1} parent=5 // pred_check_branch
        %167 = sbr.rel (%p164) target = $region12
      $region11: #{tpu_custom_call.1} parent=5 // pred_region
        %s168 = ssub.s32 %s18, 1
        // Predicated region
        $region13: #{tpu_custom_call.1} parent=11 // pred_check
          %p169 = pneg %p65
        $region14: #{tpu_custom_call.1} parent=11 // pred_check_branch
          %171 = sbr.rel (%p169) target = $region16
        $region15: #{tpu_custom_call.1} parent=11 // pred_region
          _
        $region16: #{tpu_custom_call.1} parent=11 // pred_fallthru
          _
        // Predicated region
        $region17: #{tpu_custom_call.1} parent=11 // pred_check
          %p172 = pneg %p86
        $region18: #{tpu_custom_call.1} parent=11 // pred_check_branch
          %174 = sbr.rel (%p172) target = $region20
        $region19: #{tpu_custom_call.1} parent=11 // pred_region
          _
        $region20: #{tpu_custom_call.1} parent=11 // pred_fallthru
          _
        // Predicated region
        $region21: #{tpu_custom_call.1} parent=11 // pred_check
          %p175 = pneg %p107
        $region22: #{tpu_custom_call.1} parent=11 // pred_check_branch
          %177 = sbr.rel (%p175) target = $region24
        $region23: #{tpu_custom_call.1} parent=11 // pred_region
          %s179 = ssub.s32 512, 512
          %180 = vsyncadd [#allocation6], %s179
          %s181 = sshll.u32 [#allocation5], 4
          %s182 = int_to_ptr.vmem [resolvable:$true] %s181
          %187 = dma.hbm_to_vmem [thread:$0]  %s3, 512, %s182, [#allocation6], 128, 128, 8
        $region24: #{tpu_custom_call.1} parent=11 // pred_fallthru
          _
        // Predicated region
        $region25: #{tpu_custom_call.1} parent=11 // pred_check
          %p188 = pneg %p128
        $region26: #{tpu_custom_call.1} parent=11 // pred_check_branch
          %190 = sbr.rel (%p188) target = $region28
        $region27: #{tpu_custom_call.1} parent=11 // pred_region
          _
        $region28: #{tpu_custom_call.1} parent=11 // pred_fallthru
          _
      $region12: #{tpu_custom_call.1} parent=5 // pred_fallthru
        _
      %p191 = scmp.lt.s32.totalorder %s18, 2
      // Predicated region
      $region29: #{tpu_custom_call.1} parent=5 // pred_check
        %p192 = pneg %p191
      $region30: #{tpu_custom_call.1} parent=5 // pred_check_branch
        %194 = sbr.rel (%p192) target = $region32
      $region31: #{tpu_custom_call.1} parent=5 // pred_region
        // Predicated region
        $region33: #{tpu_custom_call.1} parent=31 // pred_check
          %p195 = pneg %p38
        $region34: #{tpu_custom_call.1} parent=31 // pred_check_branch
          %197 = sbr.rel (%p195) target = $region36
        $region35: #{tpu_custom_call.1} parent=31 // pred_region
          %s198 = sand.u32 %s28, 1
          %s199 = scalar_lea.sflag [#allocation3], %s198
          %s200 = sand.u32 %s28, 1
          %s201 = smul.addr %s200, 8
          %s202 = scalar_lea.vmem [#allocation2], %s201
          %s204 = ssub.s32 128, 128
          %205 = vsyncadd %s199, %s204
          %s206 = smul.addr %s18, 128
          %s207 = scalar_lea.hbm %s0, %s206
          %s209 = sshll.u32 %s202, 4
          %s210 = int_to_ptr.vmem [resolvable:$true] %s209
          %212 = dma.hbm_to_vmem [thread:$0]  %s207, 128, %s210, %s199
        $region36: #{tpu_custom_call.1} parent=31 // pred_fallthru
          _
      $region32: #{tpu_custom_call.1} parent=5 // pred_fallthru
        _
      %p213 = scmp.le.s32.totalorder 1, %s18
      %p214 = scmp.lt.s32.totalorder %s18, 3
      %p215 = pnand %p213, %p214
      %p216 = pneg %p215
      // Predicated region
      $region37: #{tpu_custom_call.1} parent=5 // pred_check
        _
      $region38: #{tpu_custom_call.1} parent=5 // pred_check_branch
        %218 = sbr.rel (%p215) target = $region40
      $region39: #{tpu_custom_call.1} parent=5 // pred_region
        %s219 = ssub.s32 %s18, 1
        %s220 = sand.u32 %s31, 1
        %s221 = scalar_lea.sflag [#allocation3], %s220
        %s222 = sand.u32 %s31, 1
        %s223 = smul.addr %s222, 8
        %s224 = scalar_lea.vmem [#allocation2], %s223
        // Predicated region
        $region41: #{tpu_custom_call.1} parent=39 // pred_check
          %p225 = pneg %p44
        $region42: #{tpu_custom_call.1} parent=39 // pred_check_branch
          %227 = sbr.rel (%p225) target = $region44
        $region43: #{tpu_custom_call.1} parent=39 // pred_region
          %228 = dma.done %s221, 128
        $region44: #{tpu_custom_call.1} parent=39 // pred_fallthru
          _
        // Predicated region
        $region45: #{tpu_custom_call.1} parent=39 // pred_check
          %p229 = pneg %p107
        $region46: #{tpu_custom_call.1} parent=39 // pred_check_branch
          %231 = sbr.rel (%p229) target = $region48
        $region47: #{tpu_custom_call.1} parent=39 // pred_region
          %232 = dma.done [#allocation6], 512
        $region48: #{tpu_custom_call.1} parent=39 // pred_fallthru
          _
        %s233 = sand.u32 %s31, 1
        %s234 = scalar_lea.sflag [#allocation3], %s233
        %s235 = sand.u32 %s31, 1
        %s236 = smul.addr %s235, 8
        %s237 = scalar_lea.vmem [#allocation2], %s236
        %p238 = pneg %p44
        %p239 = pneg %p41
        %p240 = pneg %p65
        %p241 = pneg %p62
        %p242 = pneg %p86
        %p243 = pneg %p83
        %p244 = pneg %p107
        %p245 = pneg %p104
        %p246 = pneg %p128
        %p247 = pneg %p125
        %p248 = pneg %p154
        %p249 = pneg %p151
        %s250 = sand.u32 %s141, 1
        %s251 = scalar_lea.sflag [#allocation4], %s250
        %s252 = sand.u32 %s141, 1
        %s253 = smul.addr %s252, 8
        %s254 = scalar_lea.vmem [#allocation7], %s253
        %v256 = vld [vmem:[%s224] sm:$0xff]
        %vm257 = vcmask 261120
        %v258 = vsel %vm257, %v256, 0.0
        %259 = vadd.xlane.f32.xlu0 %v258
        %v260 = vpop.xlane.xlu0 %259
        %v261 = vrcp.pop 32.0
        %v262 = vmul.f32 %v260, %v261
        %v263 = vsub.f32 %v256, %v262
        %v264 = vmul.f32 %v263, %v263
        %v265 = vsel %vm257, %v264, 0.0
        %266 = vadd.xlane.f32.xlu0 %v265
        %v267 = vpop.xlane.xlu0 %266
        %v268 = vmul.f32 %v267, 0.032258064
        %v269 = vrsqrt.pop %v268
        %v270 = vmul.f32 %v268, %v269
        %vm271 = vcmp.eq.f32.partialorder %v268, inf
        %v272 = vsel %vm271, %v268, %v270
        %vm273 = vcmp.eq.f32.partialorder %v268, 0.0
        %v274 = vand.u32 %v268, 2147483648
        %v275 = vsel %vm273, %v274, %v272
        %v276 = vadd.f32 %v275, 1e-06
        %v277 = vrcp.pop %v276
        %v278 = vld [vmem:[%s1] sm:$0x1]
        %v279 = vld [vmem:[%s2] sm:$0x1]
        %v281 = vlaneseq
        %v282 = vshrl.u32 %v281, 7
        %v283 = vsub.s32 0, %v282
        %v284 = vrot.slane %v278, %v283
        %v286 = vmul.f32 %v277, %v284
        %v287 = vmul.f32 %v263, %v286
        %v289 = vlaneseq
        %v290 = vshrl.u32 %v289, 7
        %v291 = vsub.s32 0, %v290
        %v292 = vrot.slane %v279, %v291
        %v294 = vadd.f32 %v287, %v292
        %v295 = vpack.c.bf16 %v294, %v294
        %v296 = vld [vmem:[#allocation5] sm:$0xff]
        %v297 = vld [vmem:[#allocation5 + $0x8] sm:$0xff]
        %v298 = vld [vmem:[#allocation5 + $0x10] sm:$0xff]
        %v299 = vld [vmem:[#allocation5 + $0x18] sm:$0xff]
        %v300 = vpack.c.bf16 %v297, %v296
        %v301 = vpack.c.bf16 %v299, %v298
        %v302 = vld [vmem:[%s4] sm:$0x1]
        %v304 = vlaneseq
        %v305 = vshrl.u32 %v304, 7
        %v306 = vsub.s32 0, %v305
        %v307 = vrot.slane %v302, %v306
        %v310 = vsel %vm257, %v295, 0
        %312 = vmatprep.subr.bf16.mxu0 0
        %313 = vmatpush1.bf16.msra.mxu0 %v300
        %314 = vmatprep.subr.bf16.mxu0 0
        %315 = vmatpush1.bf16.msra.mxu0 %v301
        %316 = vmatprep.subr.bf16.mxu0 0
        %317 = vmatpush1.bf16.msra.mxu0 0
        %318 = vmatprep.subr.bf16.mxu0 0
        %319 = vmatpush1.bf16.msra.mxu0 0
        %320 = vmatprep.subr.bf16.mxu0 0
        %321 = vmatpush1.bf16.msra.mxu0 0
        %322 = vmatprep.subr.bf16.mxu0 0
        %323 = vmatpush1.bf16.msra.mxu0 0
        %324 = vmatprep.subr.bf16.mxu0 0
        %325 = vmatpush1.bf16.msra.mxu0 0
        %326 = vmatprep.subr.bf16.mxu0 0
        %327 = vmatpush1.bf16.msra.mxu0 0
        %328 = vmatprep.subr.bf16.mxu0 0
        %329 = vmatpush1.bf16.msra.mxu0 0
        %330 = vmatprep.subr.bf16.mxu0 0
        %331 = vmatpush1.bf16.msra.mxu0 0
        %332 = vmatprep.subr.bf16.mxu0 0
        %333 = vmatpush1.bf16.msra.mxu0 0
        %334 = vmatprep.subr.bf16.mxu0 0
        %335 = vmatpush1.bf16.msra.mxu0 0
        %336 = vmatprep.subr.bf16.mxu0 0
        %337 = vmatpush1.bf16.msra.mxu0 0
        %338 = vmatprep.subr.bf16.mxu0 0
        %339 = vmatpush1.bf16.msra.mxu0 0
        %340 = vmatprep.subr.bf16.mxu0 0
        %341 = vmatpush1.bf16.msra.mxu0 0
        %342 = vmatprep.subr.bf16.mxu0 0
        %343 = vmatpush1.bf16.msra.mxu0 0
        %344 = vmatprep.mubr.bf16.mxu0 0
        %345 = vmatmul.mubr.bf16.gmra.mrb[0].mxu0 %v310
        %v346 = vpop.f32.mrb[0].mxu0
        %v347 = vadd.f32 %v307, %v346
        %v348 = vpop.f32.mrb[0].mxu0
        %v349 = vpop.f32.mrb[0].mxu0
        %v350 = vpop.f32.mrb[0].mxu0
        %351 = vdwg.mxu0
        %v352 = vadd.f32 %v256, %v347
        %353 = vst.msk [vmem:[%s254] sm:$0xff] %vm257, %v352
        %s354 = sand.u32 %s141, 1
        %s355 = scalar_lea.sflag [#allocation4], %s354
        %s356 = sand.u32 %s141, 1
        %s357 = smul.addr %s356, 8
        %s358 = scalar_lea.vmem [#allocation7], %s357
        // Predicated region
        $region49: #{tpu_custom_call.1} parent=39 // pred_check
          %p359 = pneg %p151
        $region50: #{tpu_custom_call.1} parent=39 // pred_check_branch
          %361 = sbr.rel (%p359) target = $region52
        $region51: #{tpu_custom_call.1} parent=39 // pred_region
          %s363 = ssub.s32 128, 128
          %364 = vsyncadd %s355, %s363
          %s365 = smul.addr %s23, 128
          %s366 = scalar_lea.hbm %s5, %s365
          %s368 = sshll.u32 %s358, 4
          %s369 = int_to_ptr.vmem [resolvable:$true] %s368
          %371 = dma.vmem_to_hbm [thread:$0]  %s369, 128, %s366, %s355
        $region52: #{tpu_custom_call.1} parent=39 // pred_fallthru
          _
      $region40: #{tpu_custom_call.1} parent=5 // pred_fallthru
        _
      %p372 = scmp.le.s32.totalorder 2, %s18
      // Predicated region
      $region53: #{tpu_custom_call.1} parent=5 // pred_check
        %p373 = pneg %p372
      $region54: #{tpu_custom_call.1} parent=5 // pred_check_branch
        %375 = sbr.rel (%p373) target = $region56
      $region55: #{tpu_custom_call.1} parent=5 // pred_region
        %s376 = ssub.s32 %s18, 2
        // Predicated region
        $region57: #{tpu_custom_call.1} parent=55 // pred_check
          %p377 = pneg %p157
        $region58: #{tpu_custom_call.1} parent=55 // pred_check_branch
          %379 = sbr.rel (%p377) target = $region60
        $region59: #{tpu_custom_call.1} parent=55 // pred_region
          %s380 = sand.u32 %s142, 1
          %s381 = scalar_lea.sflag [#allocation4], %s380
          %s382 = sand.u32 %s142, 1
          %s383 = smul.addr %s382, 8
          %s384 = scalar_lea.vmem [#allocation7], %s383
          %385 = dma.done %s381, 128
        $region60: #{tpu_custom_call.1} parent=55 // pred_fallthru
          _
      $region56: #{tpu_custom_call.1} parent=5 // pred_fallthru
        _
    $region6: #{tpu_custom_call.1} parent=1 // loop_footer
      %s22 = sadd.s32 1, %s18
    $region7: #{tpu_custom_call.1} parent=1 // loop_footer_branch
      %17 = sbr.rel target = $region3
    $region8: #{tpu_custom_call.1} parent=1 // loop_exit
      _
    %386 = vsyncpa [#allocation3], 1
    %s387 = scalar_lea.sflag [#allocation3], 1
    %388 = vsyncpa %s387, 1
    %389 = vsyncpa [#allocation6], 1
    %390 = vsyncpa [#allocation4], 1
    %s391 = scalar_lea.sflag [#allocation4], 1
    %392 = vsyncpa %s391, 1

</llo_original>
